<compile_context>
chip_gen: v7x
topology: tpu7x:2x2x1
jax: 0.10.0
libtpu: 0.0.40
codegen_flags: <defaults>
</compile_context>

<pallas_src>
import numpy as np
import jax
import jax.numpy as jnp
from jax.experimental import pallas as pl
from jax.experimental.pallas import tpu as pltpu

BN_EPS = 1e-5
IN_FEATURES = 16
OUT_FEATURES = 5
PACK = 8                               # batch rows packed per 128-lane row
PACKED_IN = PACK * IN_FEATURES         # 128
PACKED_OUT = PACK * OUT_FEATURES       # 40


def _round_up(n, m):
    return ((n + m - 1) // m) * m


def jsc_tiny_kernel(x_ref, scale_ref, shift_ref, w_ref, b_ref, o_ref):
    # x_ref: (tile, 128) lane-packed input (8 batch rows per packed row)
    # scale_ref/shift_ref: (1, 128) folded-BN affine, tiled 8x along lanes
    # w_ref: (128, 40) block-diagonal kron(I_8, W^T),  b_ref: (1, 40) bias tiled 8x
    x = x_ref[...].astype(jnp.float32)

    # Folded BatchNorm (inference) + ReLU
    h = jnp.maximum(x * scale_ref[...] + shift_ref[...], 0.0)

    # Linear(16, 5) applied as a lane-dense (tile,128)@(128,40) MXU matmul + bias, then ReLU
    y = jnp.dot(h, w_ref[...], preferred_element_type=jnp.float32) + b_ref[...]
    o_ref[...] = jnp.maximum(y, 0.0).astype(o_ref.dtype)


def jsc_tiny_forward(x, params, *, tile_rows=512):
    """x: (B, 16) f32 or bf16.  params: raw module params
       (gamma(16,), beta(16,), running_mean(16,), running_var(16,), W(5,16), b(5,))."""
    B, F = x.shape
    assert F == IN_FEATURES
    gamma, beta, mean, var, w, b = params

    # ---- fold BN into a single affine (done once, outside the kernel) ----
    scale = (gamma * jax.lax.rsqrt(var + BN_EPS)).astype(jnp.float32)
    shift = (beta - mean * scale).astype(jnp.float32)
    scale_p = jnp.tile(scale.reshape(1, IN_FEATURES), (1, PACK))        # (1, 128)
    shift_p = jnp.tile(shift.reshape(1, IN_FEATURES), (1, PACK))        # (1, 128)

    # ---- block-diagonal weight / tiled bias for the lane-packed matmul ----
    w_bd = jnp.kron(jnp.eye(PACK, dtype=jnp.float32),
                    w.T.astype(jnp.float32))                            # (128, 40)
    b_bd = jnp.tile(b.reshape(1, OUT_FEATURES).astype(jnp.float32),
                    (1, PACK))                                          # (1, 40)

    # ---- pad batch so it packs into whole (tile, 128) blocks ----
    packed_rows = _round_up(B, PACK) // PACK
    tile = _round_up(min(tile_rows, _round_up(packed_rows, 8)), 8)
    rows_pad = _round_up(packed_rows, tile)
    b_pad = rows_pad * PACK
    if b_pad != B:
        x = jnp.pad(x, ((0, b_pad - B), (0, 0)))
    x_packed = x.reshape(rows_pad, PACKED_IN)                           # (rows_pad, 128)

    grid = (rows_pad // tile,)

    out = pl.pallas_call(
        jsc_tiny_kernel,
        out_shape=jax.ShapeDtypeStruct((rows_pad, PACKED_OUT), x.dtype),
        grid_spec=pltpu.PrefetchScalarGridSpec(
            num_scalar_prefetch=0,
            grid=grid,
            in_specs=[
                pl.BlockSpec((tile, PACKED_IN), lambda i: (i, 0)),        # x (lane-packed)
                pl.BlockSpec((1, PACKED_IN), lambda i: (0, 0)),           # scale
                pl.BlockSpec((1, PACKED_IN), lambda i: (0, 0)),           # shift
                pl.BlockSpec((PACKED_IN, PACKED_OUT), lambda i: (0, 0)),  # block-diag W
                pl.BlockSpec((1, PACKED_OUT), lambda i: (0, 0)),          # bias
            ],
            out_specs=pl.BlockSpec((tile, PACKED_OUT), lambda i: (i, 0)),
        ),
        compiler_params=pltpu.CompilerParams(
            dimension_semantics=("parallel",)),
    )(x_packed, scale_p, shift_p, w_bd, b_bd)

    # unpack (rows_pad, 40) -> (b_pad, 5) and drop padding rows
    return out.reshape(b_pad, OUT_FEATURES)[:B]


def make_params(key):
    k1, k2, k3, k4, k5, k6 = jax.random.split(key, 6)
    gamma = jax.random.normal(k1, (IN_FEATURES,), jnp.float32) * 0.1 + 1.0
    beta = jax.random.normal(k2, (IN_FEATURES,), jnp.float32) * 0.1
    running_mean = jax.random.normal(k3, (IN_FEATURES,), jnp.float32) * 0.5
    running_var = jax.random.uniform(k4, (IN_FEATURES,), jnp.float32,
                                     minval=0.5, maxval=1.5)
    # nn.Linear(16, 5): weight (5, 16), bias (5,)
    w = jax.random.normal(k5, (OUT_FEATURES, IN_FEATURES), jnp.float32) \
        * (1.0 / np.sqrt(IN_FEATURES))
    b = jax.random.normal(k6, (OUT_FEATURES,), jnp.float32) \
        * (1.0 / np.sqrt(IN_FEATURES))
    return (gamma, beta, running_mean, running_var, w, b)


def reference_forward(x, params):
    gamma, beta, mean, var, w, b = params
    h = (x - mean) / jnp.sqrt(var + BN_EPS) * gamma + beta
    h = jnp.maximum(h, 0.0)
    y = h @ w.T + b
    return jnp.maximum(y, 0.0)


if __name__ == "__main__":
    key = jax.random.PRNGKey(0)
    kx, kp = jax.random.split(key)

    # Small demo shape consistent with the module: (batch, 16) features.
    B = 36  # deliberately not a multiple of 8 to exercise the padding path
    x = jax.random.normal(kx, (B, IN_FEATURES), jnp.float32)
    params = make_params(kp)

    out = jsc_tiny_forward(x, params)
    out = jax.block_until_ready(out)

    ref = reference_forward(x, params)
    np.testing.assert_allclose(np.asarray(out), np.asarray(ref),
                               rtol=1e-5, atol=1e-5)
    print("KERNEL_OK")
</pallas_src>

<mosaic_0001>
module attributes {stable_mosaic.version = 11 : i64} {
  func.func @jsc_tiny_kernel(%arg0: i32, %arg1: memref<8x128xf32, #tpu.memory_space<vmem>>, %arg2: memref<1x128xf32, #tpu.memory_space<vmem>>, %arg3: memref<1x128xf32, #tpu.memory_space<vmem>>, %arg4: memref<128x40xf32, #tpu.memory_space<vmem>>, %arg5: memref<1x40xf32, #tpu.memory_space<vmem>>, %arg6: memref<8x40xf32, #tpu.memory_space<vmem>>) attributes {dimension_semantics = [#tpu.dimension_semantics<parallel>], iteration_bounds = array<i64: 1>, scalar_prefetch = 0 : i64, scratch_operands = 0 : i64, tpu.core_type = #tpu.core_type<tc>, window_params = [{transform_indices = @transform_0, window_bounds = array<i64: 8, 128>}, {pipeline_mode = #tpu.pipeline_mode<synchronous>, transform_indices = @transform_1, window_bounds = array<i64: 1, 128>}, {pipeline_mode = #tpu.pipeline_mode<synchronous>, transform_indices = @transform_2, window_bounds = array<i64: 1, 128>}, {pipeline_mode = #tpu.pipeline_mode<synchronous>, transform_indices = @transform_3, window_bounds = array<i64: 128, 40>}, {pipeline_mode = #tpu.pipeline_mode<synchronous>, transform_indices = @transform_4, window_bounds = array<i64: 1, 40>}, {transform_indices = @transform_5, window_bounds = array<i64: 8, 40>}]} {
    %c0 = arith.constant 0 : index
    %c0_0 = arith.constant 0 : index
    %0 = vector.load %arg1[%c0, %c0_0] : memref<8x128xf32, #tpu.memory_space<vmem>>, vector<8x128xf32>
    %c0_1 = arith.constant 0 : index
    %c0_2 = arith.constant 0 : index
    %1 = vector.load %arg2[%c0_1, %c0_2] : memref<1x128xf32, #tpu.memory_space<vmem>>, vector<1x128xf32>
    %2 = vector.broadcast %1 : vector<1x128xf32> to vector<8x128xf32>
    %3 = arith.mulf %0, %2 : vector<8x128xf32>
    %c0_3 = arith.constant 0 : index
    %c0_4 = arith.constant 0 : index
    %4 = vector.load %arg3[%c0_3, %c0_4] : memref<1x128xf32, #tpu.memory_space<vmem>>, vector<1x128xf32>
    %5 = vector.broadcast %4 : vector<1x128xf32> to vector<8x128xf32>
    %6 = arith.addf %3, %5 : vector<8x128xf32>
    %cst = arith.constant 0.000000e+00 : f32
    %7 = vector.broadcast %cst : f32 to vector<8x128xf32>
    %8 = arith.maximumf %6, %7 : vector<8x128xf32>
    %c0_5 = arith.constant 0 : index
    %c0_6 = arith.constant 0 : index
    %9 = vector.load %arg4[%c0_5, %c0_6] : memref<128x40xf32, #tpu.memory_space<vmem>>, vector<128x40xf32>
    %cst_7 = arith.constant dense<0.000000e+00> : vector<8x40xf32>
    %10 = tpu.matmul %8, %9, %cst_7 {dimension_numbers = #tpu.dot_dimension_numbers<[1], [0], [0], [1], [0, 0, 1, 1], [], []>} : vector<8x128xf32>, vector<128x40xf32>, vector<8x40xf32> -> vector<8x40xf32>
    %c0_8 = arith.constant 0 : index
    %c0_9 = arith.constant 0 : index
    %11 = vector.load %arg5[%c0_8, %c0_9] : memref<1x40xf32, #tpu.memory_space<vmem>>, vector<1x40xf32>
    %12 = vector.broadcast %11 : vector<1x40xf32> to vector<8x40xf32>
    %13 = arith.addf %10, %12 : vector<8x40xf32>
    %cst_10 = arith.constant 0.000000e+00 : f32
    %14 = vector.broadcast %cst_10 : f32 to vector<8x40xf32>
    %15 = arith.maximumf %13, %14 : vector<8x40xf32>
    %c0_11 = arith.constant 0 : index
    %c0_12 = arith.constant 0 : index
    %16 = vector.load %arg6[%c0_11, %c0_12] : memref<8x40xf32, #tpu.memory_space<vmem>>, vector<8x40xf32>
    tpu.vector_store %arg6[%c0_11, %c0_12], %15 {strides = array<i32>} : memref<8x40xf32, #tpu.memory_space<vmem>>, vector<8x40xf32>,
    return
  }
  func.func @transform_0(%arg0: i32) -> (i32, i32) {
    %c0_i32 = arith.constant 0 : i32
    %c0_i32_0 = arith.constant 0 : i32
    return %arg0, %c0_i32 : i32, i32
  }
  func.func @transform_1(%arg0: i32) -> (i32, i32) {
    %c0_i32 = arith.constant 0 : i32
    %c0_i32_0 = arith.constant 0 : i32
    %c0_i32_1 = arith.constant 0 : i32
    return %c0_i32, %c0_i32_0 : i32, i32
  }
  func.func @transform_2(%arg0: i32) -> (i32, i32) {
    %c0_i32 = arith.constant 0 : i32
    %c0_i32_0 = arith.constant 0 : i32
    %c0_i32_1 = arith.constant 0 : i32
    return %c0_i32, %c0_i32_0 : i32, i32
  }
  func.func @transform_3(%arg0: i32) -> (i32, i32) {
    %c0_i32 = arith.constant 0 : i32
    %c0_i32_0 = arith.constant 0 : i32
    %c0_i32_1 = arith.constant 0 : i32
    return %c0_i32, %c0_i32_0 : i32, i32
  }
  func.func @transform_4(%arg0: i32) -> (i32, i32) {
    %c0_i32 = arith.constant 0 : i32
    %c0_i32_0 = arith.constant 0 : i32
    %c0_i32_1 = arith.constant 0 : i32
    return %c0_i32, %c0_i32_0 : i32, i32
  }
  func.func @transform_5(%arg0: i32) -> (i32, i32) {
    %c0_i32 = arith.constant 0 : i32
    %c0_i32_0 = arith.constant 0 : i32
    return %arg0, %c0_i32 : i32, i32
  }
}

</mosaic_0001>

<llo_original>
// kernel: tpu_custom_call.1
$region0: #{tpu_custom_call.1}
  #allocation0 [shape = 'u32[]', space=smem, size = 0x4, offset = 0x4, fixed_abs, tag = 'smem constant byte address 0x4 - core index']
  #allocation1 [shape = 'u32[144,128]{1,0:T(1,128)}', space=vmem, size = 0x12000, scoped, tag = 'internal scratch']
  %s0 = inlined_call_operand.vmem [shape: f32[8,128], index: 0, kind: input, shape index: {}]
  %s1 = inlined_call_operand.vmem [shape: f32[1,128], index: 1, kind: input, shape index: {}]
  %s2 = inlined_call_operand.vmem [shape: f32[1,128], index: 2, kind: input, shape index: {}]
  %s3 = inlined_call_operand.vmem [shape: f32[128,40], index: 3, kind: input, shape index: {}]
  %s4 = inlined_call_operand.vmem [shape: f32[1,40], index: 4, kind: input, shape index: {}]
  %s5 = inlined_call_operand.hbm [shape: f32[8,40], index: 5, kind: output, shape index: {}]
  %s6 = sld [smem:[#allocation0]]
  $region30: #{tpu_custom_call.1} parent=0
    _
  %s8 = ssub.s32 1, %s6
  %s9 = scalar_select 0, %s8, %s6
  $region1: #{tpu_custom_call.1} parent=0
    #allocation2 [shape = 'u8[4096]{0}', space=vmem, size = 0x1000, scoped, tag = 'output window, operand 0, single buffered']
    #allocation3 [shape = 's32[1]{0}', space=sflag, size = 0x4, scoped, tag = 'scoped memory for tpu_custom_call.1']
    %10 = vsyncpa [#allocation3], 0
    // Predicated region
    $region2: #{tpu_custom_call.1} parent=1 // pred_check
      _
    $region3: #{tpu_custom_call.1} parent=1 // pred_check_branch
      %12 = sbr.rel (0) target = $region5
    $region4: #{tpu_custom_call.1} parent=1 // pred_region
      _
    $region5: #{tpu_custom_call.1} parent=1 // pred_fallthru
      _
    // Predicated region
    $region6: #{tpu_custom_call.1} parent=1 // pred_check
      _
    $region7: #{tpu_custom_call.1} parent=1 // pred_check_branch
      %14 = sbr.rel (0) target = $region9
    $region8: #{tpu_custom_call.1} parent=1 // pred_region
      _
    $region9: #{tpu_custom_call.1} parent=1 // pred_fallthru
      _
    // Predicated region
    $region10: #{tpu_custom_call.1} parent=1 // pred_check
      _
    $region11: #{tpu_custom_call.1} parent=1 // pred_check_branch
      %16 = sbr.rel (0) target = $region13
    $region12: #{tpu_custom_call.1} parent=1 // pred_region
      _
    $region13: #{tpu_custom_call.1} parent=1 // pred_fallthru
      _
    // Predicated region
    $region14: #{tpu_custom_call.1} parent=1 // pred_check
      _
    $region15: #{tpu_custom_call.1} parent=1 // pred_check_branch
      %18 = sbr.rel (0) target = $region17
    $region16: #{tpu_custom_call.1} parent=1 // pred_region
      _
    $region17: #{tpu_custom_call.1} parent=1 // pred_fallthru
      _
    // Predicated region
    $region18: #{tpu_custom_call.1} parent=1 // pred_check
      _
    $region19: #{tpu_custom_call.1} parent=1 // pred_check_branch
      %20 = sbr.rel (0) target = $region21
    $region20: #{tpu_custom_call.1} parent=1 // pred_region
      _
    $region21: #{tpu_custom_call.1} parent=1 // pred_fallthru
      _
    %v21 = vld [vmem:[%s0] sm:$0xff]
    %v22 = vld [vmem:[%s1] sm:$0x1]
    %v24 = vlaneseq
    %v25 = vshrl.u32 %v24, 7
    %v26 = vsub.s32 0, %v25
    %v27 = vrot.slane %v22, %v26
    %v29 = vmul.f32 %v21, %v27
    %v30 = vld [vmem:[%s2] sm:$0x1]
    %v32 = vlaneseq
    %v33 = vshrl.u32 %v32, 7
    %v34 = vsub.s32 0, %v33
    %v35 = vrot.slane %v30, %v34
    %v37 = vadd.f32 %v29, %v35
    %v38 = vmax.f32 %v37, 0.0
    %v39 = vld [vmem:[%s3] sm:$0xff]
    %v40 = vld [vmem:[%s3 + $0x8] sm:$0xff]
    %v41 = vld [vmem:[%s3 + $0x10] sm:$0xff]
    %v42 = vld [vmem:[%s3 + $0x18] sm:$0xff]
    %v43 = vld [vmem:[%s3 + $0x20] sm:$0xff]
    %v44 = vld [vmem:[%s3 + $0x28] sm:$0xff]
    %v45 = vld [vmem:[%s3 + $0x30] sm:$0xff]
    %v46 = vld [vmem:[%s3 + $0x38] sm:$0xff]
    %v47 = vld [vmem:[%s3 + $0x40] sm:$0xff]
    %v48 = vld [vmem:[%s3 + $0x48] sm:$0xff]
    %v49 = vld [vmem:[%s3 + $0x50] sm:$0xff]
    %v50 = vld [vmem:[%s3 + $0x58] sm:$0xff]
    %v51 = vld [vmem:[%s3 + $0x60] sm:$0xff]
    %v52 = vld [vmem:[%s3 + $0x68] sm:$0xff]
    %v53 = vld [vmem:[%s3 + $0x70] sm:$0xff]
    %v54 = vld [vmem:[%s3 + $0x78] sm:$0xff]
    %v55 = vld [vmem:[%s4] sm:$0x1]
    %v57 = vlaneseq
    %v58 = vshrl.u32 %v57, 7
    %v59 = vsub.s32 0, %v58
    %v60 = vrot.slane %v55, %v59
    %62 = vmatprep.subr.mxu0 0.0
    %63 = vmatpush1.msra.mxu0 %v39
    %64 = vmatprep.subr.mxu0 0.0
    %65 = vmatpush1.msra.mxu0 %v40
    %66 = vmatprep.subr.mxu0 0.0
    %67 = vmatpush1.msra.mxu0 %v41
    %68 = vmatprep.subr.mxu0 0.0
    %69 = vmatpush1.msra.mxu0 %v42
    %70 = vmatprep.subr.mxu0 0.0
    %71 = vmatpush1.msra.mxu0 %v43
    %72 = vmatprep.subr.mxu0 0.0
    %73 = vmatpush1.msra.mxu0 %v44
    %74 = vmatprep.subr.mxu0 0.0
    %75 = vmatpush1.msra.mxu0 %v45
    %76 = vmatprep.subr.mxu0 0.0
    %77 = vmatpush1.msra.mxu0 %v46
    %78 = vmatprep.subr.mxu0 0.0
    %79 = vmatpush1.msra.mxu0 %v47
    %80 = vmatprep.subr.mxu0 0.0
    %81 = vmatpush1.msra.mxu0 %v48
    %82 = vmatprep.subr.mxu0 0.0
    %83 = vmatpush1.msra.mxu0 %v49
    %84 = vmatprep.subr.mxu0 0.0
    %85 = vmatpush1.msra.mxu0 %v50
    %86 = vmatprep.subr.mxu0 0.0
    %87 = vmatpush1.msra.mxu0 %v51
    %88 = vmatprep.subr.mxu0 0.0
    %89 = vmatpush1.msra.mxu0 %v52
    %90 = vmatprep.subr.mxu0 0.0
    %91 = vmatpush1.msra.mxu0 %v53
    %92 = vmatprep.subr.mxu0 0.0
    %93 = vmatpush1.msra.mxu0 %v54
    %94 = vmatprep.subr.mxu0 0.0
    %95 = vmatpush1.msra.mxu0 0.0
    %96 = vmatprep.subr.mxu0 0.0
    %97 = vmatpush1.msra.mxu0 0.0
    %98 = vmatprep.subr.mxu0 0.0
    %99 = vmatpush1.msra.mxu0 0.0
    %100 = vmatprep.subr.mxu0 0.0
    %101 = vmatpush1.msra.mxu0 0.0
    %102 = vmatprep.subr.mxu0 0.0
    %103 = vmatpush1.msra.mxu0 0.0
    %104 = vmatprep.subr.mxu0 0.0
    %105 = vmatpush1.msra.mxu0 0.0
    %106 = vmatprep.subr.mxu0 0.0
    %107 = vmatpush1.msra.mxu0 0.0
    %108 = vmatprep.subr.mxu0 0.0
    %109 = vmatpush1.msra.mxu0 0.0
    %110 = vmatprep.subr.mxu0 0.0
    %111 = vmatpush1.msra.mxu0 0.0
    %112 = vmatprep.subr.mxu0 0.0
    %113 = vmatpush1.msra.mxu0 0.0
    %114 = vmatprep.subr.mxu0 0.0
    %115 = vmatpush1.msra.mxu0 0.0
    %116 = vmatprep.subr.mxu0 0.0
    %117 = vmatpush1.msra.mxu0 0.0
    %118 = vmatprep.subr.mxu0 0.0
    %119 = vmatpush1.msra.mxu0 0.0
    %120 = vmatprep.subr.mxu0 0.0
    %121 = vmatpush1.msra.mxu0 0.0
    %122 = vmatprep.subr.mxu0 0.0
    %123 = vmatpush1.msra.mxu0 0.0
    %124 = vmatprep.subr.mxu0 0.0
    %125 = vmatpush1.msra.mxu0 0.0
    %126 = vmatprep.mubr.f32.mxu0 0.0
    %127 = vmatmul.mubr.f32.gmra.mrb[0].mxu0 %v38
    %v128 = vpop.f32.mrb[0].mxu0
    %v129 = vadd.f32 %v60, %v128
    %v130 = vpop.f32.mrb[0].mxu0
    %131 = vdwg.mxu0
    %v132 = vmax.f32 %v129, 0.0
    %vm133 = vcmask 326656
    %134 = vst.msk [vmem:[#allocation2] sm:$0xff] %vm133, %v132
    // Predicated region
    $region22: #{tpu_custom_call.1} parent=1 // pred_check
      _
    $region23: #{tpu_custom_call.1} parent=1 // pred_check_branch
      %136 = sbr.rel (0) target = $region25
    $region24: #{tpu_custom_call.1} parent=1 // pred_region
      %s138 = ssub.s32 128, 128
      %139 = vsyncadd [#allocation3], %s138
      %s141 = sshll.u32 [#allocation2], 4
      %s142 = int_to_ptr.vmem [resolvable:$true] %s141
      %144 = dma.vmem_to_hbm [thread:$0]  %s142, 128, %s5, [#allocation3]
    $region25: #{tpu_custom_call.1} parent=1 // pred_fallthru
      _
    // Predicated region
    $region26: #{tpu_custom_call.1} parent=1 // pred_check
      _
    $region27: #{tpu_custom_call.1} parent=1 // pred_check_branch
      %146 = sbr.rel (0) target = $region29
    $region28: #{tpu_custom_call.1} parent=1 // pred_region
      %147 = dma.done [#allocation3], 128
    $region29: #{tpu_custom_call.1} parent=1 // pred_fallthru
      _
    %148 = vsyncpa [#allocation3], 1

</llo_original>
